<compile_context>
chip_gen: v7x
topology: tpu7x:2x2x1
jax: 0.10.0
libtpu: 0.0.40
codegen_flags: <defaults>
</compile_context>

<pallas_src>
import functools
import math

import jax
import jax.numpy as jnp
from jax.experimental import pallas as pl
from jax.experimental.pallas import tpu as pltpu

_BN_EPS = 1e-5


def _select_tile_caps():
    """Generation-aware matmul tile caps (TM, TN, TK)."""
    kind = ""
    try:
        kind = jax.devices()[0].device_kind.lower()
    except Exception:
        pass
    if "v5 lite" in kind or "v5e" in kind or "v5lite" in kind:
        # v5e: 4x128^2 MXU + single vector-store slot -> narrow N, tall M.
        return 512, 128, 1024
    if "v6" in kind or "v7" in kind or "7x" in kind:
        # v6e/v7x: 256-wide MXU; tiles stay far below scoped-VMEM limits.
        return 512, 256, 2048
    return 256, 256, 1024  # conservative default (v4 / unknown)


TM_CAP, TN_CAP, TK_CAP = _select_tile_caps()


def _pick_tile(extent, cap, align):
    """Pick a tile for one matmul dim.  Returns (tile, padded_extent).

    Preference: (1) full-extent block if extent <= cap (always layout-legal);
    (2) the largest `align`-aligned divisor of `extent` that is <= cap (no
    padding); (3) pad to a multiple of an aligned cap-sized tile (never hit
    for this model's shapes)."""
    if extent <= cap:
        return extent, extent
    t = (cap // align) * align
    while t >= align:
        if extent % t == 0:
            return t, extent
        t -= align
    t = (cap // align) * align
    padded = -(-extent // t) * t
    return t, padded


# ----------------------------------------------------------------------------
# Pallas kernel: C = [leaky]( A @ B + bias [+ residual] )
#   bf16 A/B operands, f32 MXU accumulation, f32 bias, bf16 residual.
# ----------------------------------------------------------------------------
def _epilogue(y, res_ref, o_ref, apply_relu, res_mode):
    if res_mode == "pre_act":
        y = y + res_ref[...].astype(jnp.float32)
    if apply_relu:
        y = jnp.maximum(y, 0.1 * y)            # LeakyReLU(negative_slope=0.1)
    if res_mode == "post_act":
        y = y + res_ref[...].astype(jnp.float32)
    o_ref[...] = y.astype(o_ref.dtype)


def _mm_kernel(*refs, apply_relu, res_mode, single_k):
    if single_k:
        # Single K step: no f32 accumulator scratch, no zero-init pass.
        if res_mode is None:
            a_ref, b_ref, bias_ref, o_ref = refs
            res_ref = None
        else:
            a_ref, b_ref, bias_ref, res_ref, o_ref = refs
        y = jnp.dot(a_ref[...], b_ref[...], preferred_element_type=jnp.float32)
        _epilogue(y + bias_ref[...], res_ref, o_ref, apply_relu, res_mode)
        return

    if res_mode is None:
        a_ref, b_ref, bias_ref, o_ref, acc_ref = refs
        res_ref = None
    else:
        a_ref, b_ref, bias_ref, res_ref, o_ref, acc_ref = refs

    @pl.when(pl.program_id(2) == 0)
    def _():
        acc_ref[...] = jnp.zeros_like(acc_ref)

    acc_ref[...] += jnp.dot(a_ref[...], b_ref[...],
                            preferred_element_type=jnp.float32)

    @pl.when(pl.program_id(2) == pl.num_programs(2) - 1)
    def _():
        _epilogue(acc_ref[...] + bias_ref[...], res_ref, o_ref,
                  apply_relu, res_mode)


def matmul_bias(a, b, bias, *, apply_relu, out_dtype,
                residual=None, res_mode=None):
    """a: (M, K) bf16, b: (K, N) bf16 (BN scale folded), bias: (N,) f32,
    residual: optional (M, N) added pre- or post-activation in the epilogue."""
    M, K = a.shape
    K2, N = b.shape
    assert K == K2
    if residual is None:
        res_mode = None
    else:
        assert res_mode in ("pre_act", "post_act")
        assert residual.shape == (M, N)

    tm, Mp = _pick_tile(M, TM_CAP, 8)
    tn, Np = _pick_tile(N, TN_CAP, 128)
    tk, Kp = _pick_tile(K, TK_CAP, 128)

    if a.dtype != jnp.bfloat16:
        a = a.astype(jnp.bfloat16)
    if b.dtype != jnp.bfloat16:
        b = b.astype(jnp.bfloat16)
    # Padding branches are kept for generality; not hit for this model.
    if Mp != M or Kp != K:
        a = jnp.pad(a, ((0, Mp - M), (0, Kp - K)))
    if Kp != K or Np != N:
        b = jnp.pad(b, ((0, Kp - K), (0, Np - N)))
    if Np != N:
        bias = jnp.pad(bias, (0, Np - N))
    if residual is not None and (Mp != M or Np != N):
        residual = jnp.pad(residual, ((0, Mp - M), (0, Np - N)))
    bias2d = bias.reshape(1, Np).astype(jnp.float32)

    k_steps = Kp // tk
    single_k = k_steps == 1

    inputs = [a, b, bias2d]
    if single_k:
        grid = (Mp // tm, Np // tn)
        in_specs = [pl.BlockSpec((tm, tk), lambda i, j: (i, 0)),
                    pl.BlockSpec((tk, tn), lambda i, j: (0, j)),
                    pl.BlockSpec((1, tn), lambda i, j: (0, j))]
        if residual is not None:
            in_specs.append(pl.BlockSpec((tm, tn), lambda i, j: (i, j)))
            inputs.append(residual)
        out_spec = pl.BlockSpec((tm, tn), lambda i, j: (i, j))
        scratch = []
        dims = ("parallel", "parallel")
    else:
        grid = (Mp // tm, Np // tn, k_steps)
        in_specs = [pl.BlockSpec((tm, tk), lambda i, j, k: (i, k)),
                    pl.BlockSpec((tk, tn), lambda i, j, k: (k, j)),
                    pl.BlockSpec((1, tn), lambda i, j, k: (0, j))]
        if residual is not None:
            # Same block index across k -> fetched once per (i, j) tile.
            in_specs.append(pl.BlockSpec((tm, tn), lambda i, j, k: (i, j)))
            inputs.append(residual)
        out_spec = pl.BlockSpec((tm, tn), lambda i, j, k: (i, j))
        scratch = [pltpu.VMEM((tm, tn), jnp.float32)]
        dims = ("parallel", "parallel", "arbitrary")

    out_bytes = Mp * Np * jnp.dtype(out_dtype).itemsize
    bytes_accessed = 2 * Mp * Kp + 2 * Kp * Np + 4 * Np + out_bytes
    if residual is not None:
        bytes_accessed += Mp * Np * residual.dtype.itemsize
    cost = pl.CostEstimate(flops=2 * Mp * Np * Kp, transcendentals=0,
                           bytes_accessed=int(bytes_accessed))

    out = pl.pallas_call(
        functools.partial(_mm_kernel, apply_relu=apply_relu,
                          res_mode=res_mode, single_k=single_k),
        out_shape=jax.ShapeDtypeStruct((Mp, Np), out_dtype),
        grid_spec=pltpu.PrefetchScalarGridSpec(
            num_scalar_prefetch=0,
            grid=grid,
            in_specs=in_specs,
            out_specs=out_spec,
            scratch_shapes=scratch,
        ),
        compiler_params=pltpu.CompilerParams(dimension_semantics=dims),
        cost_estimate=cost,
    )(*inputs)

    if Mp != M or Np != N:
        out = out[:M, :N]
    return out


# ----------------------------------------------------------------------------
# Conv block = (reshape | im2col) + fused Pallas matmul   (jitted per signature)
# ----------------------------------------------------------------------------
@functools.partial(jax.jit, static_argnames=("k", "stride", "relu", "cout",
                                             "res_mode", "out_dtype"))
def conv_block(x, wmat, bias, residual, *, k, stride, relu, cout, res_mode,
               out_dtype):
    """x: (N, H, W, Cin) NHWC bf16; wmat: (k*k*Cin, Cout_padded) bf16.
    residual (optional): (N, Ho, Wo, Cout_padded), fused into the epilogue."""
    n, h, w_, cin = x.shape
    cout_pad = wmat.shape[1]
    if k == 1 and stride == 1:
        patches = x.reshape(n * h * w_, cin)        # 1x1 conv: pure reshape
        ho, wo = h, w_
    else:
        pad = (k - 1) // 2
        xp = jnp.pad(x, ((0, 0), (pad, pad), (pad, pad), (0, 0)))
        ho = (h + 2 * pad - k) // stride + 1
        wo = (w_ + 2 * pad - k) // stride + 1
        # TODO(synk): fold the kxk tap gather (im2col) into the pallas_call
        # (extra grid axis over taps with element-offset A blocks / manual DMA
        # from the padded NHWC input, or CompilerParams(allow_input_fusion))
        # to remove the ~9x HBM read amplification of the patch matrix.
        cols = [xp[:, dy:dy + stride * ho:stride, dx:dx + stride * wo:stride, :]
                for dy in range(k) for dx in range(k)]
        patches = jnp.concatenate(cols, axis=-1).reshape(n * ho * wo, k * k * cin)

    res2d = None
    if residual is not None:
        res2d = residual.reshape(n * ho * wo, cout_pad)

    y = matmul_bias(patches, wmat, bias, apply_relu=relu, out_dtype=out_dtype,
                    residual=res2d, res_mode=res_mode)
    if cout != cout_pad:
        y = y[:, :cout]          # drop zero-padded (lane-dense) output channels
    return y.reshape(n, ho, wo, cout)


def apply_conv(x, p, out_dtype=jnp.bfloat16, residual=None, res_mode=None):
    return conv_block(x, p["wmat"], p["bias"], residual,
                      k=p["k"], stride=p["stride"], relu=p["relu"],
                      cout=p["cout"], res_mode=res_mode, out_dtype=out_dtype)


@functools.partial(jax.jit, static_argnames=("relu",))
def _upsample_concat_conv1x1(branch_lo, skip_hi, wmat, bias, *, relu):
    """leaky( conv1x1_[wmat,bias]( concat([upsample2x(branch_lo), skip_hi]) ) )
    without materializing the upsample or the concat: a 1x1 conv commutes with
    nearest upsampling, so the upsampled branch's contribution is computed at
    low resolution, upsampled, and added as a pre-activation residual inside
    the skip branch's matmul epilogue."""
    n, hl, wl, c_up = branch_lo.shape
    _, hh, wh, c_skip = skip_hi.shape
    cout = wmat.shape[1]
    w_up, w_skip = wmat[:c_up], wmat[c_up:]
    pre = matmul_bias(branch_lo.reshape(n * hl * wl, c_up), w_up,
                      jnp.zeros((cout,), jnp.float32),
                      apply_relu=False, out_dtype=jnp.bfloat16)
    pre = pre.reshape(n, hl, wl, cout)
    pre = jnp.repeat(jnp.repeat(pre, 2, axis=1), 2, axis=2)     # nearest 2x
    y = matmul_bias(skip_hi.reshape(n * hh * wh, c_skip), w_skip, bias,
                    apply_relu=relu, out_dtype=jnp.bfloat16,
                    residual=pre.reshape(n * hh * wh, cout), res_mode="pre_act")
    return y.reshape(n, hh, wh, cout)


# ----------------------------------------------------------------------------
# Deterministic parameter construction (matches module shapes, synthetic init)
# ----------------------------------------------------------------------------
def make_conv_params(key, cin, cout, k, stride=1, relu=True, with_bias=False):
    wkey, bkey = jax.random.split(key)
    n = k * k * cout
    w = jax.random.normal(wkey, (k, k, cin, cout), jnp.float32) * math.sqrt(2.0 / n)
    if with_bias:
        # final prediction conv: bias=True, no BN, no activation
        scale = jnp.ones((cout,), jnp.float32)
        bias = jax.random.normal(bkey, (cout,), jnp.float32) * 0.01
    else:
        # eval-mode BatchNorm fold (general form so trained checkpoints fold
        # correctly): scale = gamma/sqrt(var+eps), bias = beta - mean*scale.
        gamma = jnp.ones((cout,), jnp.float32)
        beta = jnp.zeros((cout,), jnp.float32)
        mean = jnp.zeros((cout,), jnp.float32)
        var = jnp.ones((cout,), jnp.float32)
        scale = gamma / jnp.sqrt(var + _BN_EPS)
        bias = beta - mean * scale
    wmat = (w * scale).reshape(k * k * cin, cout)
    # Lane-dense prediction outputs: zero-pad the 21-channel prediction convs
    # to a full 128-lane tile (unmasked vst); wrapper slices the real channels.
    if with_bias and cout % 128 != 0:
        cout_pad = -(-cout // 128) * 128
        wmat = jnp.pad(wmat, ((0, 0), (0, cout_pad - cout)))
        bias = jnp.pad(bias, (0, cout_pad - cout))
    return {"wmat": wmat.astype(jnp.bfloat16), "bias": bias,
            "k": k, "stride": stride, "relu": relu, "cout": cout}


def build_yolo_params(key, anchors_mask, num_classes):
    keys = iter(jax.random.split(key, 256))
    nk = lambda: next(keys)

    # --- darknet53 backbone ---
    bb = {"conv1": make_conv_params(nk(), 3, 32, 3)}
    inplanes = 32
    layer_defs = [([32, 64], 1), ([64, 128], 2), ([128, 256], 8),
                  ([256, 512], 8), ([512, 1024], 4)]
    layers = []
    for planes, blocks in layer_defs:
        layer = {"ds": make_conv_params(nk(), inplanes, planes[1], 3, stride=2),
                 "blocks": []}
        inplanes = planes[1]
        for _ in range(blocks):
            layer["blocks"].append(
                (make_conv_params(nk(), inplanes, planes[0], 1),
                 make_conv_params(nk(), planes[0], planes[1], 3)))
        layers.append(layer)
    bb["layers"] = layers

    # --- YOLO head ---
    def make_last_layers_params(filters_list, in_filters, out_filter):
        f0, f1 = filters_list
        return [make_conv_params(nk(), in_filters, f0, 1),
                make_conv_params(nk(), f0, f1, 3),
                make_conv_params(nk(), f1, f0, 1),
                make_conv_params(nk(), f0, f1, 3),
                make_conv_params(nk(), f1, f0, 1),
                make_conv_params(nk(), f0, f1, 3),
                make_conv_params(nk(), f1, out_filter, 1, relu=False, with_bias=True)]

    of0 = len(anchors_mask[0]) * (num_classes + 5)
    of1 = len(anchors_mask[1]) * (num_classes + 5)
    of2 = len(anchors_mask[2]) * (num_classes + 5)
    return {
        "backbone": bb,
        "last_layer0": make_last_layers_params([512, 1024], 1024, of0),
        "last_layer1_conv": make_conv_params(nk(), 512, 256, 1),
        "last_layer1": make_last_layers_params([256, 512], 512 + 256, of1),
        "last_layer2_conv": make_conv_params(nk(), 256, 128, 1),
        "last_layer2": make_last_layers_params([128, 256], 256 + 128, of2),
    }


# ----------------------------------------------------------------------------
# Forward pass (NHWC, bf16 activations internally)
# ----------------------------------------------------------------------------
def basic_block(x, blk):
    p1, p2 = blk
    out = apply_conv(x, p1)
    # residual add fused into the 3x3 conv's epilogue (added post-activation,
    # matching `out += residual` after relu2 in the PyTorch BasicBlock)
    return apply_conv(out, p2, residual=x, res_mode="post_act")


def darknet_forward(x, bb):
    x = apply_conv(x, bb["conv1"])
    feats = []
    for layer in bb["layers"]:
        x = apply_conv(x, layer["ds"])
        for blk in layer["blocks"]:
            x = basic_block(x, blk)
        feats.append(x)
    return feats[2], feats[3], feats[4]  # out3, out4, out5


def run_seq(x, seq, final_dtype=jnp.bfloat16):
    # TODO(synk): for the tiny-spatial head chains, fuse the whole sequence into
    # one pallas_call (activations resident in VMEM) to cut per-call overhead.
    for idx, p in enumerate(seq):
        dt = final_dtype if idx == len(seq) - 1 else jnp.bfloat16
        x = apply_conv(x, p, out_dtype=dt)
    return x


def yolo_body_forward(x_nchw, params):
    # bf16 cast before the transpose -> half the transpose's HBM traffic.
    x = jnp.transpose(x_nchw.astype(jnp.bfloat16), (0, 2, 3, 1))  # NCHW -> NHWC
    x2, x1, x0 = darknet_forward(x, params["backbone"])

    out0_branch = run_seq(x0, params["last_layer0"][:5])
    out0 = run_seq(out0_branch, params["last_layer0"][5:], final_dtype=jnp.float32)

    x1_small = apply_conv(out0_branch, params["last_layer1_conv"])
    p1_first = params["last_layer1"][0]
    x1_feat = _upsample_concat_conv1x1(x1_small, x1, p1_first["wmat"],
                                       p1_first["bias"], relu=p1_first["relu"])
    out1_branch = run_seq(x1_feat, params["last_layer1"][1:5])
    out1 = run_seq(out1_branch, params["last_layer1"][5:], final_dtype=jnp.float32)

    x2_small = apply_conv(out1_branch, params["last_layer2_conv"])
    p2_first = params["last_layer2"][0]
    x2_feat = _upsample_concat_conv1x1(x2_small, x2, p2_first["wmat"],
                                       p2_first["bias"], relu=p2_first["relu"])
    out2 = run_seq(x2_feat, params["last_layer2"][1:], final_dtype=jnp.float32)

    to_nchw = lambda t: jnp.transpose(t, (0, 3, 1, 2))
    return to_nchw(out0), to_nchw(out1), to_nchw(out2)


# ----------------------------------------------------------------------------
if __name__ == "__main__":
    key = jax.random.PRNGKey(0)
    pkey, xkey = jax.random.split(key)

    anchors_mask = [[6, 7, 8], [3, 4, 5], [0, 1, 2]]
    num_classes = 2  # -> 3 * (2 + 5) = 21 output channels per scale

    params = build_yolo_params(pkey, anchors_mask, num_classes)

    # small input consistent with the module: RGB, 32x32 (divisible by 32)
    x = jax.random.normal(xkey, (2, 3, 32, 32), jnp.float32)  # NCHW like PyTorch

    out0, out1, out2 = yolo_body_forward(x, params)
    jax.block_until_ready((out0, out1, out2))

    assert out0.shape == (2, 21, 1, 1), out0.shape
    assert out1.shape == (2, 21, 2, 2), out1.shape
    assert out2.shape == (2, 21, 4, 4), out2.shape
    assert out0.dtype == jnp.float32

    print("KERNEL_OK")
</pallas_src>

<mosaic_0001>
module attributes {stable_mosaic.version = 11 : i64} {
  func.func @_mm_kernel(%arg0: i32, %arg1: i32, %arg2: memref<256x27xbf16, #tpu.memory_space<vmem>>, %arg3: memref<27x32xbf16, #tpu.memory_space<vmem>>, %arg4: memref<1x32xf32, #tpu.memory_space<vmem>>, %arg5: memref<256x32xbf16, #tpu.memory_space<vmem>>) attributes {dimension_semantics = [#tpu.dimension_semantics<parallel>, #tpu.dimension_semantics<parallel>], iteration_bounds = array<i64: 8, 1>, scalar_prefetch = 0 : i64, scratch_operands = 0 : i64, tpu.core_type = #tpu.core_type<tc>, window_params = [{transform_indices = @transform_0, window_bounds = array<i64: 256, 27>}, {transform_indices = @transform_1, window_bounds = array<i64: 27, 32>}, {transform_indices = @transform_2, window_bounds = array<i64: 1, 32>}, {transform_indices = @transform_3, window_bounds = array<i64: 256, 32>}]} {
    %c0 = arith.constant 0 : index
    %c0_0 = arith.constant 0 : index
    %0 = vector.load %arg2[%c0, %c0_0] : memref<256x27xbf16, #tpu.memory_space<vmem>>, vector<256x27xbf16>
    %c0_1 = arith.constant 0 : index
    %c0_2 = arith.constant 0 : index
    %1 = vector.load %arg3[%c0_1, %c0_2] : memref<27x32xbf16, #tpu.memory_space<vmem>>, vector<27x32xbf16>
    %cst = arith.constant dense<0.000000e+00> : vector<256x32xf32>
    %2 = tpu.matmul %0, %1, %cst {dimension_numbers = #tpu.dot_dimension_numbers<[1], [0], [0], [1], [0, 0, 1, 1], [], []>} : vector<256x27xbf16>, vector<27x32xbf16>, vector<256x32xf32> -> vector<256x32xf32>
    %c0_3 = arith.constant 0 : index
    %c0_4 = arith.constant 0 : index
    %3 = vector.load %arg4[%c0_3, %c0_4] : memref<1x32xf32, #tpu.memory_space<vmem>>, vector<1x32xf32>
    %4 = vector.broadcast %3 : vector<1x32xf32> to vector<256x32xf32>
    %5 = arith.addf %2, %4 : vector<256x32xf32>
    %cst_5 = arith.constant 1.000000e-01 : f32
    %6 = vector.broadcast %cst_5 : f32 to vector<256x32xf32>
    %7 = arith.mulf %6, %5 : vector<256x32xf32>
    %8 = arith.maximumf %5, %7 : vector<256x32xf32>
    %9 = arith.truncf %8 : vector<256x32xf32> to vector<256x32xbf16>
    %c0_6 = arith.constant 0 : index
    %c0_7 = arith.constant 0 : index
    %10 = vector.load %arg5[%c0_6, %c0_7] : memref<256x32xbf16, #tpu.memory_space<vmem>>, vector<256x32xbf16>
    tpu.vector_store %arg5[%c0_6, %c0_7], %9 {strides = array<i32>} : memref<256x32xbf16, #tpu.memory_space<vmem>>, vector<256x32xbf16>,
    return
  }
  func.func @transform_0(%arg0: i32, %arg1: i32) -> (i32, i32) {
    %c0_i32 = arith.constant 0 : i32
    %c0_i32_0 = arith.constant 0 : i32
    return %arg0, %c0_i32 : i32, i32
  }
  func.func @transform_1(%arg0: i32, %arg1: i32) -> (i32, i32) {
    %c0_i32 = arith.constant 0 : i32
    %c0_i32_0 = arith.constant 0 : i32
    return %c0_i32, %arg1 : i32, i32
  }
  func.func @transform_2(%arg0: i32, %arg1: i32) -> (i32, i32) {
    %c0_i32 = arith.constant 0 : i32
    %c0_i32_0 = arith.constant 0 : i32
    return %c0_i32, %arg1 : i32, i32
  }
  func.func @transform_3(%arg0: i32, %arg1: i32) -> (i32, i32) {
    %c0_i32 = arith.constant 0 : i32
    return %arg0, %arg1 : i32, i32
  }
}

</mosaic_0001>

<llo_original>
// kernel: conv_block.1
$region0: #{conv_block.1}
  #allocation0 [shape = 'u32[]', space=smem, size = 0x4, offset = 0x4, fixed_abs, tag = 'smem constant byte address 0x4 - core index']
  #allocation1 [shape = 'u32[144,128]{1,0:T(1,128)}', space=vmem, size = 0x12000, scoped, tag = 'internal scratch']
  %s0 = inlined_call_operand.vmem [shape: bf16[2048,27], index: 0, kind: input, shape index: {}]
  %s1 = inlined_call_operand.vmem [shape: bf16[27,32], index: 1, kind: input, shape index: {}]
  %s2 = inlined_call_operand.vmem [shape: f32[1,32], index: 2, kind: input, shape index: {}]
  %s3 = inlined_call_operand.hbm [shape: bf16[2048,32], index: 3, kind: output, shape index: {}]
  %s4 = sld [smem:[#allocation0]]
  $region45: #{conv_block.1} parent=0
    _
  %s6 = ssub.s32 1, %s4
  %s7 = scalar_select 0, %s6, %s4
  $region1: #{conv_block.1} parent=0
    #allocation2 [shape = 'u8[131072]{0}', space=vmem, size = 0x20000, scoped, tag = 'output window, operand 0']
    #allocation3 [shape = 's32[2]{0}', space=sflag, size = 0x8, scoped, tag = 'scoped memory for conv_block.1']
    %8 = vsyncpa [#allocation3], 0
    %s9 = scalar_lea.sflag [#allocation3], 1
    %10 = vsyncpa %s9, 0
    loop: start=0, step=1, limit=10
    $region2: #{conv_block.1} parent=1 // loop_pre_header
      _
    $region3: #{conv_block.1} parent=1 // loop_header
      %s12 = sphi 0, %s16
      %p13 = scmp.ge.s32.totalorder %s12, 10
      %s19 = sphi 0, %s31
      %s20 = sphi 0, %s27
      %s21 = sphi 0, %s19
      %s22 = sphi 0, %s20
      %s23 = sphi 0, %s21
      %s24 = sphi 0, %s22
      %s34 = sphi 0, %s36
      %s37 = sphi 0, %s34
      %s38 = sphi 0, %s37
      %s54 = sphi 0, %s38
      %s60 = sphi 0, %s62
      %s63 = sphi 0, %s60
      %s64 = sphi 0, %s63
      %s80 = sphi 0, %s64
      %s86 = sphi 0, %s88
      %s89 = sphi 0, %s86
      %s90 = sphi 0, %s89
      %s106 = sphi 0, %s90
      %s114 = sphi 0, %s116
      %s117 = sphi 0, %s114
      %s118 = sphi 0, %s117
      %s134 = sphi 0, %s118
    $region4: #{conv_block.1} parent=1 // loop_header_branch
      %15 = sbr.rel (%p13) target = $region8
    $region5: #{conv_block.1} parent=1 // loop_body
      %s17 = ssub.s32 %s12, 1
      %s18 = ssub.s32 %s12, 2
      %s25 = sadd.s32 1, %s20
      %p26 = scmp.ge.s32.totalorder %s25, 1
      %s27 = scalar_select %p26, 0, %s25
      %s28 = sadd.s32 1, %s19
      %s29 = scalar_select %p26, %s28, %s19
      %p30 = scmp.ge.s32.totalorder %s29, 8
      %s31 = scalar_select %p30, 0, %s29
      %s32 = ssub.s32 %s19, %s31
      %p33 = scmp.eq.s32.totalorder %s32, 0
      %s35 = sadd.s32 %s34, 1
      %s36 = scalar_select %p33, %s34, %s35
      %p39 = pneg %p33
      %p40 = scmp.eq.s32.totalorder %s12, 7
      %p41 = por %p39, %p40
      %p42 = scmp.ne.s32.totalorder %s34, %s37
      %p43 = scmp.eq.s32.totalorder %s12, 0
      %p44 = por %p42, %p43
      %p45 = scmp.ne.s32.totalorder %s34, %s37
      %p46 = scmp.eq.s32.totalorder %s17, 7
      %p47 = por %p45, %p46
      %p48 = scmp.ne.s32.totalorder %s37, %s38
      %p49 = scmp.eq.s32.totalorder %s17, 0
      %p50 = por %p48, %p49
      %p51 = scmp.ne.s32.totalorder %s37, %s38
      %p52 = scmp.eq.s32.totalorder %s18, 7
      %p53 = por %p51, %p52
      %p55 = scmp.ne.s32.totalorder %s38, %s54
      %p56 = scmp.eq.s32.totalorder %s18, 0
      %p57 = por %p55, %p56
      %s58 = ssub.s32 %s20, %s27
      %p59 = scmp.eq.s32.totalorder %s58, 0
      %s61 = sadd.s32 %s60, 1
      %s62 = scalar_select %p59, %s60, %s61
      %p65 = pneg %p59
      %p66 = scmp.eq.s32.totalorder %s12, 7
      %p67 = por %p65, %p66
      %p68 = scmp.ne.s32.totalorder %s60, %s63
      %p69 = scmp.eq.s32.totalorder %s12, 0
      %p70 = por %p68, %p69
      %p71 = scmp.ne.s32.totalorder %s60, %s63
      %p72 = scmp.eq.s32.totalorder %s17, 7
      %p73 = por %p71, %p72
      %p74 = scmp.ne.s32.totalorder %s63, %s64
      %p75 = scmp.eq.s32.totalorder %s17, 0
      %p76 = por %p74, %p75
      %p77 = scmp.ne.s32.totalorder %s63, %s64
      %p78 = scmp.eq.s32.totalorder %s18, 7
      %p79 = por %p77, %p78
      %p81 = scmp.ne.s32.totalorder %s64, %s80
      %p82 = scmp.eq.s32.totalorder %s18, 0
      %p83 = por %p81, %p82
      %s84 = ssub.s32 %s20, %s27
      %p85 = scmp.eq.s32.totalorder %s84, 0
      %s87 = sadd.s32 %s86, 1
      %s88 = scalar_select %p85, %s86, %s87
      %p91 = pneg %p85
      %p92 = scmp.eq.s32.totalorder %s12, 7
      %p93 = por %p91, %p92
      %p94 = scmp.ne.s32.totalorder %s86, %s89
      %p95 = scmp.eq.s32.totalorder %s12, 0
      %p96 = por %p94, %p95
      %p97 = scmp.ne.s32.totalorder %s86, %s89
      %p98 = scmp.eq.s32.totalorder %s17, 7
      %p99 = por %p97, %p98
      %p100 = scmp.ne.s32.totalorder %s89, %s90
      %p101 = scmp.eq.s32.totalorder %s17, 0
      %p102 = por %p100, %p101
      %p103 = scmp.ne.s32.totalorder %s89, %s90
      %p104 = scmp.eq.s32.totalorder %s18, 7
      %p105 = por %p103, %p104
      %p107 = scmp.ne.s32.totalorder %s90, %s106
      %p108 = scmp.eq.s32.totalorder %s18, 0
      %p109 = por %p107, %p108
      %s110 = ssub.s32 %s19, %s31
      %s111 = ssub.s32 %s20, %s27
      %s112 = sor.u32 %s110, %s111
      %p113 = scmp.eq.s32.totalorder %s112, 0
      %s115 = sadd.s32 %s114, 1
      %s116 = scalar_select %p113, %s114, %s115
      %p119 = pneg %p113
      %p120 = scmp.eq.s32.totalorder %s12, 7
      %p121 = por %p119, %p120
      %p122 = scmp.ne.s32.totalorder %s114, %s117
      %p123 = scmp.eq.s32.totalorder %s12, 0
      %p124 = por %p122, %p123
      %p125 = scmp.ne.s32.totalorder %s114, %s117
      %p126 = scmp.eq.s32.totalorder %s17, 7
      %p127 = por %p125, %p126
      %p128 = scmp.ne.s32.totalorder %s117, %s118
      %p129 = scmp.eq.s32.totalorder %s17, 0
      %p130 = por %p128, %p129
      %p131 = scmp.ne.s32.totalorder %s117, %s118
      %p132 = scmp.eq.s32.totalorder %s18, 7
      %p133 = por %p131, %p132
      %p135 = scmp.ne.s32.totalorder %s118, %s134
      %p136 = scmp.eq.s32.totalorder %s18, 0
      %p137 = por %p135, %p136
      %p138 = scmp.le.s32.totalorder 1, %s12
      %p139 = scmp.lt.s32.totalorder %s12, 9
      %p140 = pnand %p138, %p139
      %p141 = pneg %p140
      // Predicated region
      $region9: #{conv_block.1} parent=5 // pred_check
        _
      $region10: #{conv_block.1} parent=5 // pred_check_branch
        %143 = sbr.rel (%p140) target = $region12
      $region11: #{conv_block.1} parent=5 // pred_region
        %s144 = ssub.s32 %s12, 1
        // Predicated region
        $region13: #{conv_block.1} parent=11 // pred_check
          %p145 = pneg %p76
        $region14: #{conv_block.1} parent=11 // pred_check_branch
          %147 = sbr.rel (%p145) target = $region16
        $region15: #{conv_block.1} parent=11 // pred_region
          %p148 = scmp.lt.s32.totalorder %s22, 0
          %s149 = scalar_select %p148, %s22, 0
          %s150 = smul.addr %s149, 4
          %s151 = scalar_lea.vmem %s1, %s150
        $region16: #{conv_block.1} parent=11 // pred_fallthru
          _
        // Predicated region
        $region17: #{conv_block.1} parent=11 // pred_check
          %p152 = pneg %p102
        $region18: #{conv_block.1} parent=11 // pred_check_branch
          %154 = sbr.rel (%p152) target = $region20
        $region19: #{conv_block.1} parent=11 // pred_region
          %p155 = scmp.lt.s32.totalorder %s22, 0
          %s156 = scalar_select %p155, %s22, 0
          %s157 = scalar_lea.vmem %s2, %s156
        $region20: #{conv_block.1} parent=11 // pred_fallthru
          _
      $region12: #{conv_block.1} parent=5 // pred_fallthru
        _
      %p158 = scmp.lt.s32.totalorder %s12, 8
      // Predicated region
      $region21: #{conv_block.1} parent=5 // pred_check
        %p159 = pneg %p158
      $region22: #{conv_block.1} parent=5 // pred_check_branch
        %161 = sbr.rel (%p159) target = $region24
      $region23: #{conv_block.1} parent=5 // pred_region
        // Predicated region
        $region25: #{conv_block.1} parent=23 // pred_check
          %p162 = pneg %p44
        $region26: #{conv_block.1} parent=23 // pred_check_branch
          %164 = sbr.rel (%p162) target = $region28
        $region27: #{conv_block.1} parent=23 // pred_region
          %s165 = smul.u32 32, %s19
          %p166 = scmp.lt.s32.totalorder %s165, 255
          %s167 = scalar_select %p166, %s165, 255
          %s168 = smul.addr %s167, 4
          %s169 = scalar_lea.vmem %s0, %s168
          %s170 = smul.u32 32, %s19
        $region28: #{conv_block.1} parent=23 // pred_fallthru
          _
      $region24: #{conv_block.1} parent=5 // pred_fallthru
        _
      %p171 = scmp.le.s32.totalorder 1, %s12
      %p172 = scmp.lt.s32.totalorder %s12, 9
      %p173 = pnand %p171, %p172
      %p174 = pneg %p173
      // Predicated region
      $region29: #{conv_block.1} parent=5 // pred_check
        _
      $region30: #{conv_block.1} parent=5 // pred_check_branch
        %176 = sbr.rel (%p173) target = $region32
      $region31: #{conv_block.1} parent=5 // pred_region
        %s177 = ssub.s32 %s12, 1
        %s178 = smul.u32 32, %s21
        %p179 = scmp.lt.s32.totalorder %s178, 255
        %s180 = scalar_select %p179, %s178, 255
        %s181 = smul.addr %s180, 4
        %s182 = scalar_lea.vmem %s0, %s181
        %p183 = pneg %p50
        %p184 = pneg %p47
        %p185 = scmp.lt.s32.totalorder %s22, 0
        %s186 = scalar_select %p185, %s22, 0
        %s187 = smul.addr %s186, 4
        %s188 = scalar_lea.vmem %s1, %s187
        %p189 = pneg %p76
        %p190 = pneg %p73
        %p191 = scmp.lt.s32.totalorder %s22, 0
        %s192 = scalar_select %p191, %s22, 0
        %s193 = scalar_lea.vmem %s2, %s192
        %p194 = pneg %p102
        %p195 = pneg %p99
        %p196 = pneg %p130
        %p197 = pneg %p127
        %s198 = sand.u32 %s117, 1
        %s199 = scalar_lea.sflag [#allocation3], %s198
        %s200 = sand.u32 %s117, 1
        %s201 = smul.addr %s200, 128
        %s202 = scalar_lea.vmem [#allocation2], %s201
        %s203 = smul.u32 32, %s21
        %p204 = scmp.lt.s32.totalorder %s203, 255
        %s205 = scalar_select %p204, %s203, 255
        %s206 = smul.addr %s205, 4
        %s207 = scalar_lea.vmem %s0, %s206
        %s208 = smul.u32 32, %s21
        %p209 = scmp.lt.s32.totalorder %s22, 0
        %s210 = scalar_select %p209, %s22, 0
        %s211 = smul.addr %s210, 4
        %s212 = scalar_lea.vmem %s1, %s211
        %p213 = scmp.lt.s32.totalorder %s22, 0
        %s214 = scalar_select %p213, %s22, 0
        %s215 = scalar_lea.vmem %s2, %s214
        %s216 = smul.u32 32, %s21
        %v218 = vld [vmem:[%s207] sm:$0xf]
        %v219 = vld [vmem:[%s207 + $0x4] sm:$0xf]
        %v220 = vld [vmem:[%s207 + $0x8] sm:$0xf]
        %v221 = vld [vmem:[%s207 + $0xc] sm:$0xf]
        %v222 = vld [vmem:[%s207 + $0x10] sm:$0xf]
        %v223 = vld [vmem:[%s207 + $0x14] sm:$0xf]
        %v224 = vld [vmem:[%s207 + $0x18] sm:$0xf]
        %v225 = vld [vmem:[%s207 + $0x1c] sm:$0xf]
        %v226 = vld [vmem:[%s207 + $0x20] sm:$0xf]
        %v227 = vld [vmem:[%s207 + $0x24] sm:$0xf]
        %v228 = vld [vmem:[%s207 + $0x28] sm:$0xf]
        %v229 = vld [vmem:[%s207 + $0x2c] sm:$0xf]
        %v230 = vld [vmem:[%s207 + $0x30] sm:$0xf]
        %v231 = vld [vmem:[%s207 + $0x34] sm:$0xf]
        %v232 = vld [vmem:[%s207 + $0x38] sm:$0xf]
        %v233 = vld [vmem:[%s207 + $0x3c] sm:$0xf]
        %v234 = vld [vmem:[%s207 + $0x40] sm:$0xf]
        %v235 = vld [vmem:[%s207 + $0x44] sm:$0xf]
        %v236 = vld [vmem:[%s207 + $0x48] sm:$0xf]
        %v237 = vld [vmem:[%s207 + $0x4c] sm:$0xf]
        %v238 = vld [vmem:[%s207 + $0x50] sm:$0xf]
        %v239 = vld [vmem:[%s207 + $0x54] sm:$0xf]
        %v240 = vld [vmem:[%s207 + $0x58] sm:$0xf]
        %v241 = vld [vmem:[%s207 + $0x5c] sm:$0xf]
        %v242 = vld [vmem:[%s207 + $0x60] sm:$0xf]
        %v243 = vld [vmem:[%s207 + $0x64] sm:$0xf]
        %v244 = vld [vmem:[%s207 + $0x68] sm:$0xf]
        %v245 = vld [vmem:[%s207 + $0x6c] sm:$0xf]
        %v246 = vld [vmem:[%s207 + $0x70] sm:$0xf]
        %v247 = vld [vmem:[%s207 + $0x74] sm:$0xf]
        %v248 = vld [vmem:[%s207 + $0x78] sm:$0xf]
        %v249 = vld [vmem:[%s207 + $0x7c] sm:$0xf]
        %v250 = vld [vmem:[%s212] sm:$0xf]
        %v251 = vld [vmem:[%s212 + $0x4] sm:$0xf]
        %v252 = vld [vmem:[%s212 + $0x8] sm:$0xf]
        %v253 = vld [vmem:[%s212 + $0xc] sm:$0x3]
        %v254 = vld [vmem:[%s215] sm:$0x1]
        %v256 = vlaneseq
        %v257 = vshrl.u32 %v256, 7
        %v258 = vsub.s32 0, %v257
        %v259 = vrot.slane %v254, %v258
        %v293 = vunpack.c.l.b16 %v218
        %v294 = vunpack.c.l.b16 %v219
        %v295 = vunpack.c.l.b16 %v220
        %v296 = vunpack.c.l.b16 %v221
        %v297 = vunpack.c.l.b16 %v222
        %v298 = vunpack.c.l.b16 %v223
        %v299 = vunpack.c.l.b16 %v224
        %v300 = vunpack.c.l.b16 %v225
        %v301 = vunpack.c.l.b16 %v226
        %v302 = vunpack.c.l.b16 %v227
        %v303 = vunpack.c.l.b16 %v228
        %v304 = vunpack.c.l.b16 %v229
        %v305 = vunpack.c.l.b16 %v230
        %v306 = vunpack.c.l.b16 %v231
        %v307 = vunpack.c.l.b16 %v232
        %v308 = vunpack.c.l.b16 %v233
        %v309 = vunpack.c.l.b16 %v234
        %v310 = vunpack.c.l.b16 %v235
        %v311 = vunpack.c.l.b16 %v236
        %v312 = vunpack.c.l.b16 %v237
        %v313 = vunpack.c.l.b16 %v238
        %v314 = vunpack.c.l.b16 %v239
        %v315 = vunpack.c.l.b16 %v240
        %v316 = vunpack.c.l.b16 %v241
        %v317 = vunpack.c.l.b16 %v242
        %v318 = vunpack.c.l.b16 %v243
        %v319 = vunpack.c.l.b16 %v244
        %v320 = vunpack.c.l.b16 %v245
        %v321 = vunpack.c.l.b16 %v246
        %v322 = vunpack.c.l.b16 %v247
        %v323 = vunpack.c.l.b16 %v248
        %v324 = vunpack.c.l.b16 %v249
        %v325 = vpack.c.b16 %v294, %v293
        %v326 = vpack.c.b16 %v296, %v295
        %v327 = vpack.c.b16 %v298, %v297
        %v328 = vpack.c.b16 %v300, %v299
        %v329 = vpack.c.b16 %v302, %v301
        %v330 = vpack.c.b16 %v304, %v303
        %v331 = vpack.c.b16 %v306, %v305
        %v332 = vpack.c.b16 %v308, %v307
        %v333 = vpack.c.b16 %v310, %v309
        %v334 = vpack.c.b16 %v312, %v311
        %v335 = vpack.c.b16 %v314, %v313
        %v336 = vpack.c.b16 %v316, %v315
        %v337 = vpack.c.b16 %v318, %v317
        %v338 = vpack.c.b16 %v320, %v319
        %v339 = vpack.c.b16 %v322, %v321
        %v340 = vpack.c.b16 %v324, %v323
        %v345 = vunpack.c.l.b16 %v250
        %v346 = vunpack.c.l.b16 %v251
        %v347 = vunpack.c.l.b16 %v252
        %v348 = vunpack.c.l.b16 %v253
        %v349 = vpack.c.b16 %v346, %v345
        %v350 = vpack.c.b16 %v348, %v347
        %vm352 = vcmask 220160
        %v354 = vsel %vm352, %v325, 0
        %v357 = vsel %vm352, %v326, 0
        %v360 = vsel %vm352, %v327, 0
        %v363 = vsel %vm352, %v328, 0
        %v366 = vsel %vm352, %v329, 0
        %v369 = vsel %vm352, %v330, 0
        %v372 = vsel %vm352, %v331, 0
        %v375 = vsel %vm352, %v332, 0
        %v378 = vsel %vm352, %v333, 0
        %v381 = vsel %vm352, %v334, 0
        %v384 = vsel %vm352, %v335, 0
        %v387 = vsel %vm352, %v336, 0
        %v390 = vsel %vm352, %v337, 0
        %v393 = vsel %vm352, %v338, 0
        %v396 = vsel %vm352, %v339, 0
        %v399 = vsel %vm352, %v340, 0
        %vm401 = vcmask 1044480
        %vm402 = vcmask 1045504
        %v403 = vsel %vm401, 4294967295, 65535
        %v404 = vsel %vm402, %v403, 0
        %v406 = vand.u32 %v350, %v404
        %408 = vmatprep.subr.bf16.mxu0 0
        %409 = vmatpush1.bf16.msra.mxu0 %v349
        %410 = vmatprep.subr.bf16.mxu0 0
        %411 = vmatpush1.bf16.msra.mxu0 %v406
        %412 = vmatprep.subr.bf16.mxu0 0
        %413 = vmatpush1.bf16.msra.mxu0 0
        %414 = vmatprep.subr.bf16.mxu0 0
        %415 = vmatpush1.bf16.msra.mxu0 0
        %416 = vmatprep.subr.bf16.mxu0 0
        %417 = vmatpush1.bf16.msra.mxu0 0
        %418 = vmatprep.subr.bf16.mxu0 0
        %419 = vmatpush1.bf16.msra.mxu0 0
        %420 = vmatprep.subr.bf16.mxu0 0
        %421 = vmatpush1.bf16.msra.mxu0 0
        %422 = vmatprep.subr.bf16.mxu0 0
        %423 = vmatpush1.bf16.msra.mxu0 0
        %424 = vmatprep.subr.bf16.mxu0 0
        %425 = vmatpush1.bf16.msra.mxu0 0
        %426 = vmatprep.subr.bf16.mxu0 0
        %427 = vmatpush1.bf16.msra.mxu0 0
        %428 = vmatprep.subr.bf16.mxu0 0
        %429 = vmatpush1.bf16.msra.mxu0 0
        %430 = vmatprep.subr.bf16.mxu0 0
        %431 = vmatpush1.bf16.msra.mxu0 0
        %432 = vmatprep.subr.bf16.mxu0 0
        %433 = vmatpush1.bf16.msra.mxu0 0
        %434 = vmatprep.subr.bf16.mxu0 0
        %435 = vmatpush1.bf16.msra.mxu0 0
        %436 = vmatprep.subr.bf16.mxu0 0
        %437 = vmatpush1.bf16.msra.mxu0 0
        %438 = vmatprep.subr.bf16.mxu0 0
        %439 = vmatpush1.bf16.msra.mxu0 0
        %440 = vmatprep.mubr.bf16.mxu0 0
        %441 = vmatmul.mubr.bf16.gmra.mrb[0].mxu0 %v354
        %v442 = vpop.f32.mrb[0].mxu0
        %v443 = vadd.f32 %v259, %v442
        %v444 = vpop.f32.mrb[0].mxu0
        %v445 = vpop.f32.mrb[0].mxu0
        %v446 = vadd.f32 %v259, %v445
        %v447 = vpop.f32.mrb[0].mxu0
        %448 = vmatprep.mubr.bf16.mxu0 0
        %449 = vmatmul.mubr.bf16.gmra.mrb[0].mxu0 %v357
        %v450 = vpop.f32.mrb[0].mxu0
        %v451 = vadd.f32 %v259, %v450
        %v452 = vpop.f32.mrb[0].mxu0
        %v453 = vpop.f32.mrb[0].mxu0
        %v454 = vadd.f32 %v259, %v453
        %v455 = vpop.f32.mrb[0].mxu0
        %456 = vmatprep.mubr.bf16.mxu0 0
        %457 = vmatmul.mubr.bf16.gmra.mrb[0].mxu0 %v360
        %v458 = vpop.f32.mrb[0].mxu0
        %v459 = vadd.f32 %v259, %v458
        %v460 = vpop.f32.mrb[0].mxu0
        %v461 = vpop.f32.mrb[0].mxu0
        %v462 = vadd.f32 %v259, %v461
        %v463 = vpop.f32.mrb[0].mxu0
        %464 = vmatprep.mubr.bf16.mxu0 0
        %465 = vmatmul.mubr.bf16.gmra.mrb[0].mxu0 %v363
        %v466 = vpop.f32.mrb[0].mxu0
        %v467 = vadd.f32 %v259, %v466
        %v468 = vpop.f32.mrb[0].mxu0
        %v469 = vpop.f32.mrb[0].mxu0
        %v470 = vadd.f32 %v259, %v469
        %v471 = vpop.f32.mrb[0].mxu0
        %472 = vmatprep.mubr.bf16.mxu0 0
        %473 = vmatmul.mubr.bf16.gmra.mrb[0].mxu0 %v366
        %v474 = vpop.f32.mrb[0].mxu0
        %v475 = vadd.f32 %v259, %v474
        %v476 = vpop.f32.mrb[0].mxu0
        %v477 = vpop.f32.mrb[0].mxu0
        %v478 = vadd.f32 %v259, %v477
        %v479 = vpop.f32.mrb[0].mxu0
        %480 = vmatprep.mubr.bf16.mxu0 0
        %481 = vmatmul.mubr.bf16.gmra.mrb[0].mxu0 %v369
        %v482 = vpop.f32.mrb[0].mxu0
        %v483 = vadd.f32 %v259, %v482
        %v484 = vpop.f32.mrb[0].mxu0
        %v485 = vpop.f32.mrb[0].mxu0
        %v486 = vadd.f32 %v259, %v485
        %v487 = vpop.f32.mrb[0].mxu0
        %488 = vmatprep.mubr.bf16.mxu0 0
        %489 = vmatmul.mubr.bf16.gmra.mrb[0].mxu0 %v372
        %v490 = vpop.f32.mrb[0].mxu0
        %v491 = vadd.f32 %v259, %v490
        %v492 = vpop.f32.mrb[0].mxu0
        %v493 = vpop.f32.mrb[0].mxu0
        %v494 = vadd.f32 %v259, %v493
        %v495 = vpop.f32.mrb[0].mxu0
        %496 = vmatprep.mubr.bf16.mxu0 0
        %497 = vmatmul.mubr.bf16.gmra.mrb[0].mxu0 %v375
        %v498 = vpop.f32.mrb[0].mxu0
        %v499 = vadd.f32 %v259, %v498
        %v500 = vpop.f32.mrb[0].mxu0
        %v501 = vpop.f32.mrb[0].mxu0
        %v502 = vadd.f32 %v259, %v501
        %v503 = vpop.f32.mrb[0].mxu0
        %504 = vmatprep.mubr.bf16.mxu0 0
        %505 = vmatmul.mubr.bf16.gmra.mrb[0].mxu0 %v378
        %v506 = vpop.f32.mrb[0].mxu0
        %v507 = vadd.f32 %v259, %v506
        %v508 = vpop.f32.mrb[0].mxu0
        %v509 = vpop.f32.mrb[0].mxu0
        %v510 = vadd.f32 %v259, %v509
        %v511 = vpop.f32.mrb[0].mxu0
        %512 = vmatprep.mubr.bf16.mxu0 0
        %513 = vmatmul.mubr.bf16.gmra.mrb[0].mxu0 %v381
        %v514 = vpop.f32.mrb[0].mxu0
        %v515 = vadd.f32 %v259, %v514
        %v516 = vpop.f32.mrb[0].mxu0
        %v517 = vpop.f32.mrb[0].mxu0
        %v518 = vadd.f32 %v259, %v517
        %v519 = vpop.f32.mrb[0].mxu0
        %520 = vmatprep.mubr.bf16.mxu0 0
        %521 = vmatmul.mubr.bf16.gmra.mrb[0].mxu0 %v384
        %v522 = vpop.f32.mrb[0].mxu0
        %v523 = vadd.f32 %v259, %v522
        %v524 = vpop.f32.mrb[0].mxu0
        %v525 = vpop.f32.mrb[0].mxu0
        %v526 = vadd.f32 %v259, %v525
        %v527 = vpop.f32.mrb[0].mxu0
        %528 = vmatprep.mubr.bf16.mxu0 0
        %529 = vmatmul.mubr.bf16.gmra.mrb[0].mxu0 %v387
        %v530 = vpop.f32.mrb[0].mxu0
        %v531 = vadd.f32 %v259, %v530
        %v532 = vpop.f32.mrb[0].mxu0
        %v533 = vpop.f32.mrb[0].mxu0
        %v534 = vadd.f32 %v259, %v533
        %v535 = vpop.f32.mrb[0].mxu0
        %536 = vmatprep.mubr.bf16.mxu0 0
        %537 = vmatmul.mubr.bf16.gmra.mrb[0].mxu0 %v390
        %v538 = vpop.f32.mrb[0].mxu0
        %v539 = vadd.f32 %v259, %v538
        %v540 = vpop.f32.mrb[0].mxu0
        %v541 = vpop.f32.mrb[0].mxu0
        %v542 = vadd.f32 %v259, %v541
        %v543 = vpop.f32.mrb[0].mxu0
        %544 = vmatprep.mubr.bf16.mxu0 0
        %545 = vmatmul.mubr.bf16.gmra.mrb[0].mxu0 %v393
        %v546 = vpop.f32.mrb[0].mxu0
        %v547 = vadd.f32 %v259, %v546
        %v548 = vpop.f32.mrb[0].mxu0
        %v549 = vpop.f32.mrb[0].mxu0
        %v550 = vadd.f32 %v259, %v549
        %v551 = vpop.f32.mrb[0].mxu0
        %552 = vmatprep.mubr.bf16.mxu0 0
        %553 = vmatmul.mubr.bf16.gmra.mrb[0].mxu0 %v396
        %v554 = vpop.f32.mrb[0].mxu0
        %v555 = vadd.f32 %v259, %v554
        %v556 = vpop.f32.mrb[0].mxu0
        %v557 = vpop.f32.mrb[0].mxu0
        %v558 = vadd.f32 %v259, %v557
        %v559 = vpop.f32.mrb[0].mxu0
        %560 = vmatprep.mubr.bf16.mxu0 0
        %561 = vmatmul.mubr.bf16.gmra.mrb[0].mxu0 %v399
        %v562 = vpop.f32.mrb[0].mxu0
        %v563 = vadd.f32 %v259, %v562
        %v564 = vpop.f32.mrb[0].mxu0
        %v565 = vpop.f32.mrb[0].mxu0
        %v566 = vadd.f32 %v259, %v565
        %v567 = vpop.f32.mrb[0].mxu0
        %568 = vdwg.mxu0
        %v569 = vmul.f32 %v443, 0.1
        %v570 = vmul.f32 %v446, 0.1
        %v571 = vmul.f32 %v451, 0.1
        %v572 = vmul.f32 %v454, 0.1
        %v573 = vmul.f32 %v459, 0.1
        %v574 = vmul.f32 %v462, 0.1
        %v575 = vmul.f32 %v467, 0.1
        %v576 = vmul.f32 %v470, 0.1
        %v577 = vmul.f32 %v475, 0.1
        %v578 = vmul.f32 %v478, 0.1
        %v579 = vmul.f32 %v483, 0.1
        %v580 = vmul.f32 %v486, 0.1
        %v581 = vmul.f32 %v491, 0.1
        %v582 = vmul.f32 %v494, 0.1
        %v583 = vmul.f32 %v499, 0.1
        %v584 = vmul.f32 %v502, 0.1
        %v585 = vmul.f32 %v507, 0.1
        %v586 = vmul.f32 %v510, 0.1
        %v587 = vmul.f32 %v515, 0.1
        %v588 = vmul.f32 %v518, 0.1
        %v589 = vmul.f32 %v523, 0.1
        %v590 = vmul.f32 %v526, 0.1
        %v591 = vmul.f32 %v531, 0.1
        %v592 = vmul.f32 %v534, 0.1
        %v593 = vmul.f32 %v539, 0.1
        %v594 = vmul.f32 %v542, 0.1
        %v595 = vmul.f32 %v547, 0.1
        %v596 = vmul.f32 %v550, 0.1
        %v597 = vmul.f32 %v555, 0.1
        %v598 = vmul.f32 %v558, 0.1
        %v599 = vmul.f32 %v563, 0.1
        %v600 = vmul.f32 %v566, 0.1
        %v601 = vmax.f32 %v443, %v569
        %v602 = vmax.f32 %v446, %v570
        %v603 = vmax.f32 %v451, %v571
        %v604 = vmax.f32 %v454, %v572
        %v605 = vmax.f32 %v459, %v573
        %v606 = vmax.f32 %v462, %v574
        %v607 = vmax.f32 %v467, %v575
        %v608 = vmax.f32 %v470, %v576
        %v609 = vmax.f32 %v475, %v577
        %v610 = vmax.f32 %v478, %v578
        %v611 = vmax.f32 %v483, %v579
        %v612 = vmax.f32 %v486, %v580
        %v613 = vmax.f32 %v491, %v581
        %v614 = vmax.f32 %v494, %v582
        %v615 = vmax.f32 %v499, %v583
        %v616 = vmax.f32 %v502, %v584
        %v617 = vmax.f32 %v507, %v585
        %v618 = vmax.f32 %v510, %v586
        %v619 = vmax.f32 %v515, %v587
        %v620 = vmax.f32 %v518, %v588
        %v621 = vmax.f32 %v523, %v589
        %v622 = vmax.f32 %v526, %v590
        %v623 = vmax.f32 %v531, %v591
        %v624 = vmax.f32 %v534, %v592
        %v625 = vmax.f32 %v539, %v593
        %v626 = vmax.f32 %v542, %v594
        %v627 = vmax.f32 %v547, %v595
        %v628 = vmax.f32 %v550, %v596
        %v629 = vmax.f32 %v555, %v597
        %v630 = vmax.f32 %v558, %v598
        %v631 = vmax.f32 %v563, %v599
        %v632 = vmax.f32 %v566, %v600
        %v633 = vpack.c.bf16 %v602, %v601
        %v634 = vpack.c.bf16 %v604, %v603
        %v635 = vpack.c.bf16 %v606, %v605
        %v636 = vpack.c.bf16 %v608, %v607
        %v637 = vpack.c.bf16 %v610, %v609
        %v638 = vpack.c.bf16 %v612, %v611
        %v639 = vpack.c.bf16 %v614, %v613
        %v640 = vpack.c.bf16 %v616, %v615
        %v641 = vpack.c.bf16 %v618, %v617
        %v642 = vpack.c.bf16 %v620, %v619
        %v643 = vpack.c.bf16 %v622, %v621
        %v644 = vpack.c.bf16 %v624, %v623
        %v645 = vpack.c.bf16 %v626, %v625
        %v646 = vpack.c.bf16 %v628, %v627
        %v647 = vpack.c.bf16 %v630, %v629
        %v648 = vpack.c.bf16 %v632, %v631
        %v665 = vunpack.c.l.b16 %v633
        %v666 = vunpack.c.h.b16 %v633
        %v667 = vunpack.c.l.b16 %v634
        %v668 = vunpack.c.h.b16 %v634
        %v669 = vunpack.c.l.b16 %v635
        %v670 = vunpack.c.h.b16 %v635
        %v671 = vunpack.c.l.b16 %v636
        %v672 = vunpack.c.h.b16 %v636
        %v673 = vunpack.c.l.b16 %v637
        %v674 = vunpack.c.h.b16 %v637
        %v675 = vunpack.c.l.b16 %v638
        %v676 = vunpack.c.h.b16 %v638
        %v677 = vunpack.c.l.b16 %v639
        %v678 = vunpack.c.h.b16 %v639
        %v679 = vunpack.c.l.b16 %v640
        %v680 = vunpack.c.h.b16 %v640
        %v681 = vunpack.c.l.b16 %v641
        %v682 = vunpack.c.h.b16 %v641
        %v683 = vunpack.c.l.b16 %v642
        %v684 = vunpack.c.h.b16 %v642
        %v685 = vunpack.c.l.b16 %v643
        %v686 = vunpack.c.h.b16 %v643
        %v687 = vunpack.c.l.b16 %v644
        %v688 = vunpack.c.h.b16 %v644
        %v689 = vunpack.c.l.b16 %v645
        %v690 = vunpack.c.h.b16 %v645
        %v691 = vunpack.c.l.b16 %v646
        %v692 = vunpack.c.h.b16 %v646
        %v693 = vunpack.c.l.b16 %v647
        %v694 = vunpack.c.h.b16 %v647
        %v695 = vunpack.c.l.b16 %v648
        %v696 = vunpack.c.h.b16 %v648
        %v697 = vpack.c.b16 %v665, %v665
        %v698 = vpack.c.b16 %v666, %v666
        %v699 = vpack.c.b16 %v667, %v667
        %v700 = vpack.c.b16 %v668, %v668
        %v701 = vpack.c.b16 %v669, %v669
        %v702 = vpack.c.b16 %v670, %v670
        %v703 = vpack.c.b16 %v671, %v671
        %v704 = vpack.c.b16 %v672, %v672
        %v705 = vpack.c.b16 %v673, %v673
        %v706 = vpack.c.b16 %v674, %v674
        %v707 = vpack.c.b16 %v675, %v675
        %v708 = vpack.c.b16 %v676, %v676
        %v709 = vpack.c.b16 %v677, %v677
        %v710 = vpack.c.b16 %v678, %v678
        %v711 = vpack.c.b16 %v679, %v679
        %v712 = vpack.c.b16 %v680, %v680
        %v713 = vpack.c.b16 %v681, %v681
        %v714 = vpack.c.b16 %v682, %v682
        %v715 = vpack.c.b16 %v683, %v683
        %v716 = vpack.c.b16 %v684, %v684
        %v717 = vpack.c.b16 %v685, %v685
        %v718 = vpack.c.b16 %v686, %v686
        %v719 = vpack.c.b16 %v687, %v687
        %v720 = vpack.c.b16 %v688, %v688
        %v721 = vpack.c.b16 %v689, %v689
        %v722 = vpack.c.b16 %v690, %v690
        %v723 = vpack.c.b16 %v691, %v691
        %v724 = vpack.c.b16 %v692, %v692
        %v725 = vpack.c.b16 %v693, %v693
        %v726 = vpack.c.b16 %v694, %v694
        %v727 = vpack.c.b16 %v695, %v695
        %v728 = vpack.c.b16 %v696, %v696
        %vm761 = vcmask 257024
        %762 = vst.msk [vmem:[%s202] sm:$0xf] %vm761, %v697
        %763 = vst.msk [vmem:[%s202 + $0x4] sm:$0xf] %vm761, %v698
        %764 = vst.msk [vmem:[%s202 + $0x8] sm:$0xf] %vm761, %v699
        %765 = vst.msk [vmem:[%s202 + $0xc] sm:$0xf] %vm761, %v700
        %766 = vst.msk [vmem:[%s202 + $0x10] sm:$0xf] %vm761, %v701
        %767 = vst.msk [vmem:[%s202 + $0x14] sm:$0xf] %vm761, %v702
        %768 = vst.msk [vmem:[%s202 + $0x18] sm:$0xf] %vm761, %v703
        %769 = vst.msk [vmem:[%s202 + $0x1c] sm:$0xf] %vm761, %v704
        %770 = vst.msk [vmem:[%s202 + $0x20] sm:$0xf] %vm761, %v705
        %771 = vst.msk [vmem:[%s202 + $0x24] sm:$0xf] %vm761, %v706
        %772 = vst.msk [vmem:[%s202 + $0x28] sm:$0xf] %vm761, %v707
        %773 = vst.msk [vmem:[%s202 + $0x2c] sm:$0xf] %vm761, %v708
        %774 = vst.msk [vmem:[%s202 + $0x30] sm:$0xf] %vm761, %v709
        %775 = vst.msk [vmem:[%s202 + $0x34] sm:$0xf] %vm761, %v710
        %776 = vst.msk [vmem:[%s202 + $0x38] sm:$0xf] %vm761, %v711
        %777 = vst.msk [vmem:[%s202 + $0x3c] sm:$0xf] %vm761, %v712
        %778 = vst.msk [vmem:[%s202 + $0x40] sm:$0xf] %vm761, %v713
        %779 = vst.msk [vmem:[%s202 + $0x44] sm:$0xf] %vm761, %v714
        %780 = vst.msk [vmem:[%s202 + $0x48] sm:$0xf] %vm761, %v715
        %781 = vst.msk [vmem:[%s202 + $0x4c] sm:$0xf] %vm761, %v716
        %782 = vst.msk [vmem:[%s202 + $0x50] sm:$0xf] %vm761, %v717
        %783 = vst.msk [vmem:[%s202 + $0x54] sm:$0xf] %vm761, %v718
        %784 = vst.msk [vmem:[%s202 + $0x58] sm:$0xf] %vm761, %v719
        %785 = vst.msk [vmem:[%s202 + $0x5c] sm:$0xf] %vm761, %v720
        %786 = vst.msk [vmem:[%s202 + $0x60] sm:$0xf] %vm761, %v721
        %787 = vst.msk [vmem:[%s202 + $0x64] sm:$0xf] %vm761, %v722
        %788 = vst.msk [vmem:[%s202 + $0x68] sm:$0xf] %vm761, %v723
        %789 = vst.msk [vmem:[%s202 + $0x6c] sm:$0xf] %vm761, %v724
        %790 = vst.msk [vmem:[%s202 + $0x70] sm:$0xf] %vm761, %v725
        %791 = vst.msk [vmem:[%s202 + $0x74] sm:$0xf] %vm761, %v726
        %792 = vst.msk [vmem:[%s202 + $0x78] sm:$0xf] %vm761, %v727
        %793 = vst.msk [vmem:[%s202 + $0x7c] sm:$0xf] %vm761, %v728
        %s794 = sand.u32 %s117, 1
        %s795 = scalar_lea.sflag [#allocation3], %s794
        %s796 = sand.u32 %s117, 1
        %s797 = smul.addr %s796, 128
        %s798 = scalar_lea.vmem [#allocation2], %s797
        // Predicated region
        $region33: #{conv_block.1} parent=31 // pred_check
          %p799 = pneg %p127
        $region34: #{conv_block.1} parent=31 // pred_check_branch
          %801 = sbr.rel (%p799) target = $region36
        $region35: #{conv_block.1} parent=31 // pred_region
          %s802 = smul.u32 32, %s21
          %s804 = ssub.s32 2048, 2048
          %805 = vsyncadd %s795, %s804
          %s806 = sadd.s32 %s22, %s802
          %s807 = smul.addr %s806, 64
          %s808 = scalar_lea.hbm %s3, %s807
          %s809 = sshll.u32 %s798, 4
          %s810 = int_to_ptr.vmem [resolvable:$true] %s809
          %815 = dma.vmem_to_hbm [thread:$0]  %s810, 2048, %s808, %s795, 64, 64, 4
        $region36: #{conv_block.1} parent=31 // pred_fallthru
          _
      $region32: #{conv_block.1} parent=5 // pred_fallthru
        _
      %p816 = scmp.le.s32.totalorder 2, %s12
      // Predicated region
      $region37: #{conv_block.1} parent=5 // pred_check
        %p817 = pneg %p816
      $region38: #{conv_block.1} parent=5 // pred_check_branch
        %819 = sbr.rel (%p817) target = $region40
      $region39: #{conv_block.1} parent=5 // pred_region
        %s820 = ssub.s32 %s12, 2
        // Predicated region
        $region41: #{conv_block.1} parent=39 // pred_check
          %p821 = pneg %p133
        $region42: #{conv_block.1} parent=39 // pred_check_branch
          %823 = sbr.rel (%p821) target = $region44
        $region43: #{conv_block.1} parent=39 // pred_region
          %s824 = sand.u32 %s118, 1
          %s825 = scalar_lea.sflag [#allocation3], %s824
          %s826 = sand.u32 %s118, 1
          %s827 = smul.addr %s826, 128
          %s828 = scalar_lea.vmem [#allocation2], %s827
          %829 = dma.done %s825, 2048
        $region44: #{conv_block.1} parent=39 // pred_fallthru
          _
      $region40: #{conv_block.1} parent=5 // pred_fallthru
        _
    $region6: #{conv_block.1} parent=1 // loop_footer
      %s16 = sadd.s32 1, %s12
    $region7: #{conv_block.1} parent=1 // loop_footer_branch
      %11 = sbr.rel target = $region3
    $region8: #{conv_block.1} parent=1 // loop_exit
      _
    %830 = vsyncpa [#allocation3], 1
    %s831 = scalar_lea.sflag [#allocation3], 1
    %832 = vsyncpa %s831, 1

</llo_original>
